<compile_context>
chip_gen: v7x
topology: tpu7x:2x2x1
jax: 0.10.0
libtpu: 0.0.40
codegen_flags: <defaults>
</compile_context>

<pallas_src>
import jax
import jax.numpy as jnp
import numpy as np
from jax.experimental import pallas as pl
from jax.experimental.pallas import tpu as pltpu


# ---------------------------------------------------------------------------
# Configuration (small, TPU-friendly stand-ins for the original dimensions)
# ---------------------------------------------------------------------------
N_BATCH = 2
C0, C1, C2 = 3, 16, 32            # input / conv1 / conv2 channels
C0P = 8                           # conv1 input channels zero-padded to a sublane tile
H1 = W1 = 16                      # input spatial size
H2, W2 = H1 // 2, W1 // 2         # after pool1 (8, 8)
H3, W3 = H2 // 2, W2 // 2         # after pool2 (4, 4)
PW1, PW2 = W1 + 2, W2 + 2         # padded row strides of the two conv frames
S_HW = H3 * W3                    # 16 spatial positions per image after pool2
FEAT = C2 * S_HW                  # 512  encoder feature size (nn.Flatten)
HID1 = FEAT // 2                  # 256  mirrors Linear(F, F/2)
HID2 = 64                         # stands in for the 2048 hidden
NUM_POINTS = 24                   # stands in for 14592
OUT_DIM = NUM_POINTS * 3          # 72


def _round_up(x, m):
    return (x + m - 1) // m * m


# Lane-padded sizes: last dims kept multiples of 128 (dense vregs, unmasked vst).
L1 = N_BATCH * (H1 + 2) * (W1 + 2); L1P = _round_up(L1, 128)   # 648 -> 768
L2 = N_BATCH * (H2 + 2) * (W2 + 2); L2P = _round_up(L2, 128)   # 200 -> 256
S3 = N_BATCH * S_HW;                S3P = _round_up(S3, 128)   # 32  -> 128
HID2P = _round_up(HID2, 128)                                   # 64  -> 128
OUTP = _round_up(OUT_DIM, 128)                                 # 72  -> 128
BATCH_PAD = 8                                                  # sublane-aligned batch

# 3x3 taps in PyTorch weight order: k = (di+1)*3 + (dj+1)  <->  w[:, :, di+1, dj+1]
_TAPS = tuple((di, dj) for di in (-1, 0, 1) for dj in (-1, 0, 1))

# ---------------------------------------------------------------------------
# Layout: "fully padded flat" activations.
#
# A conv-layer input with C channels and N images of (H, W) is a 2-D array
# A of shape (C, L), lane index  t = n*(H+2)*(W+2) + (h+1)*(W+2) + (w+1)
# (one zero row/col around every image, plus zero tail lanes up to a multiple
# of 128).  A 3x3 / pad-1 conv tap (di, dj) is then A cyclically lane-shifted
# by di*(W+2) + dj.  INVARIANT: real-position lanes never read across an image
# boundary (the zero pad rows/cols absorb every +-(W+3) window) and the cyclic
# wrap-around only ever lands on pad / tail lanes, which neither the pool
# anchors nor any selector column read.  Pad lanes of conv outputs therefore
# hold relu(bias)-style garbage by design and are never consumed.
# ---------------------------------------------------------------------------


# ---------------------------------------------------------------------------
# pltpu.roll sign convention.
# pltpu.roll is expected to match np.roll (y[t] = x[t - shift]); per the perf
# review the convention is verified once on-device with a tiny eager probe
# before the forward pass is traced (zero cost to the forward itself).
# ---------------------------------------------------------------------------
_ROLL_NP_STYLE = True


def _detect_roll_semantics():
    global _ROLL_NP_STYLE

    def _probe(x_ref, o_ref):
        o_ref[...] = pltpu.roll(x_ref[...], shift=1, axis=1)

    x = jnp.asarray(np.tile(np.arange(128, dtype=np.float32), (8, 1)))
    y = pl.pallas_call(
        _probe, out_shape=jax.ShapeDtypeStruct((8, 128), jnp.float32))(x)
    _ROLL_NP_STYLE = bool(float(y[0, 1]) == 0.0)   # np.roll: y[1] = x[0] = 0


def _lane_shift(x, off):
    """y[:, t] = x[:, (t + off) mod L]   (off is a static Python int).

    One XLU lane rotation (idle slot next to MXU/VPU work) instead of the
    previous slice + concatenate, which materialized VMEM copies."""
    if off == 0:
        return x
    l = x.shape[-1]
    shift = (-off if _ROLL_NP_STYLE else off) % l
    return pltpu.roll(x, shift=shift, axis=x.ndim - 1)


# ---------------------------------------------------------------------------
# In-kernel helpers (values only — everything stays in VMEM/vregs)
# ---------------------------------------------------------------------------
def _conv3x3_relu(x_f32, w_ref, b_ref, row_stride):
    """3x3, stride-1, 'same' conv + bias + ReLU as ONE MXU dot.

    x_f32 : (CinP, L) f32 fully-padded-flat activations (zero pad rows/cols).
    w_ref : (Cout, 9*CinP) bf16, column index k*CinP + c, k = (di+1)*3+(dj+1).
    b_ref : (Cout, 1) f32.
    returns (Cout, L) f32.
    """
    taps = [_lane_shift(x_f32, di * row_stride + dj) for di, dj in _TAPS]
    stack = jnp.concatenate(taps, axis=0).astype(jnp.bfloat16)      # (9*CinP, L)
    y = jnp.dot(w_ref[...], stack, preferred_element_type=jnp.float32)
    return jnp.maximum(y + b_ref[...], 0.0)                         # f32 epilogue


def _maxpool2x2(a, row_stride):
    """max over {t, t+1, t+rs, t+rs+1}: the correct 2x2-pool value at every
    odd-(h, w) padded-coordinate anchor lane — the only lanes the following
    0/1 selection matmul reads."""
    return jnp.maximum(jnp.maximum(a, _lane_shift(a, 1)),
                       jnp.maximum(_lane_shift(a, row_stride),
                                   _lane_shift(a, row_stride + 1)))


# ---------------------------------------------------------------------------
# The fused kernel: encoder + flatten + decoder in one pallas_call
# ---------------------------------------------------------------------------
def _cnn_kernel(x_ref, w1_ref, b1_ref, sel1_ref, w2_ref, b2_ref, sel2_ref,
                fw1_ref, fb1_ref, fw2_ref, fb2_ref, fw3_ref, fb3_ref,
                o_ref, feat_ref):
    # ---- encoder: conv1 -> ReLU -> pool1 -> conv2 -> ReLU -> pool2 ---------
    a1 = _conv3x3_relu(x_ref[...], w1_ref, b1_ref, PW1)              # (C1, L1P)
    p1 = jnp.dot(_maxpool2x2(a1, PW1).astype(jnp.bfloat16), sel1_ref[...],
                 preferred_element_type=jnp.float32)                 # (C1, L2P)
    a2 = _conv3x3_relu(p1, w2_ref, b2_ref, PW2)                      # (C2, L2P)
    enc = jnp.dot(_maxpool2x2(a2, PW2).astype(jnp.bfloat16), sel2_ref[...],
                  preferred_element_type=jnp.float32)                # (C2, S3P)

    # ---- nn.Flatten (NCHW order), done in-kernel through a VMEM scratch ----
    # feat[b, c*16 + s] = enc[c, b*16 + s]; 64 static 16-lane copies (~4 KB).
    # TODO(synk): at the real feature-map sizes replace the unrolled copies
    # with a tiled XLU transpose / pltpu.einshape.
    feat_ref[...] = jnp.zeros_like(feat_ref)
    for b in range(N_BATCH):
        for c in range(C2):
            feat_ref[b, c * S_HW:(c + 1) * S_HW] = enc[c, b * S_HW:(b + 1) * S_HW]

    # ---- decoder: fc1 -> ReLU -> fc2 -> ReLU -> fc3, chained in VMEM -------
    h = feat_ref[...].astype(jnp.bfloat16)                           # (8, FEAT)
    h = jnp.maximum(jnp.dot(h, fw1_ref[...],
                            preferred_element_type=jnp.float32) + fb1_ref[...], 0.0)
    h = jnp.maximum(jnp.dot(h.astype(jnp.bfloat16), fw2_ref[...],
                            preferred_element_type=jnp.float32) + fb2_ref[...], 0.0)
    o_ref[...] = (jnp.dot(h.astype(jnp.bfloat16), fw3_ref[...],
                          preferred_element_type=jnp.float32) + fb3_ref[...])


# ---------------------------------------------------------------------------
# Host-side constants (built at trace time)
# ---------------------------------------------------------------------------
def _pool_selector(n, h_in, w_in, l_in_pad, l_out_pad, *, pad_out):
    """0/1 (L_in_pad, L_out_pad) bf16 matrix: picks the 2x2-pool anchor lanes of
    a fully padded flat frame and scatters them into the next fully padded
    frame (pad_out=True, its pad rows/cols come out exactly zero) or into the
    dense order n*Ho*Wo + ho*Wo + wo (pad_out=False)."""
    h_out, w_out = h_in // 2, w_in // 2
    w_pad_in, w_pad_out = w_in + 2, w_out + 2
    stride_in = (h_in + 2) * w_pad_in
    stride_out = (h_out + 2) * w_pad_out if pad_out else h_out * w_out
    sel = np.zeros((l_in_pad, l_out_pad), np.float32)
    for b in range(n):
        for ho in range(h_out):
            for wo in range(w_out):
                t_in = b * stride_in + (2 * ho + 1) * w_pad_in + (2 * wo + 1)
                if pad_out:
                    t_out = b * stride_out + (ho + 1) * w_pad_out + (wo + 1)
                else:
                    t_out = b * stride_out + ho * w_out + wo
                sel[t_in, t_out] = 1.0
    return jnp.asarray(sel, dtype=jnp.bfloat16)


def _conv_weight_matrix(w_oihw, cin_pad):
    """(Cout, Cin, 3, 3) torch layout -> (Cout, 9*cin_pad) bf16 with column
    index k*cin_pad + c, k = (di+1)*3 + (dj+1), matching the in-kernel stack."""
    cout, cin = w_oihw.shape[0], w_oihw.shape[1]
    w = jnp.transpose(w_oihw, (0, 2, 3, 1))                  # (Cout, kh, kw, Cin)
    w = jnp.pad(w, ((0, 0), (0, 0), (0, 0), (0, cin_pad - cin)))
    return w.reshape(cout, 9 * cin_pad).astype(jnp.bfloat16)


# ---------------------------------------------------------------------------
# Parameters (synthetic, PyTorch-style layouts / uniform init)
# ---------------------------------------------------------------------------
def init_params(key):
    ks = jax.random.split(key, 10)

    def u(k, shape, fan_in):
        b = 1.0 / float(np.sqrt(fan_in))
        return jax.random.uniform(k, shape, jnp.float32, -b, b)

    return {
        "w1": u(ks[0], (C1, C0, 3, 3), C0 * 9), "b1": u(ks[1], (C1,), C0 * 9),
        "w2": u(ks[2], (C2, C1, 3, 3), C1 * 9), "b2": u(ks[3], (C2,), C1 * 9),
        # fc weights stored (in, out) == torch W.T
        "fc1_w": u(ks[4], (FEAT, HID1), FEAT), "fc1_b": u(ks[5], (HID1,), FEAT),
        "fc2_w": u(ks[6], (HID1, HID2), HID1), "fc2_b": u(ks[7], (HID2,), HID1),
        "fc3_w": u(ks[8], (HID2, OUT_DIM), HID2),
        "fc3_b": u(ks[9], (OUT_DIM,), HID2),
    }


# ---------------------------------------------------------------------------
# Forward pass: exactly ONE pallas_call
# ---------------------------------------------------------------------------
_VMEM = pl.BlockSpec(memory_space=pltpu.MemorySpace.VMEM)


def cnn_forward(x_nchw, params):
    """x_nchw: (N_BATCH, 3, 16, 16) float32 (PyTorch NCHW convention)."""
    n = x_nchw.shape[0]
    assert n == N_BATCH, "kernel constants are specialized to N_BATCH"

    # --- host glue (~25 KB): NCHW -> channels-major fully-padded-flat -------
    xp = jnp.pad(x_nchw, ((0, 0), (0, C0P - C0), (1, 1), (1, 1)))  # (n, 8, 18, 18)
    x_flat = jnp.transpose(xp, (1, 0, 2, 3)).reshape(C0P, L1)
    x_flat = jnp.pad(x_flat, ((0, 0), (0, L1P - L1)))              # (8, 768) f32

    # --- parameters in kernel layout (bf16 MXU operands, f32 biases) --------
    w1m = _conv_weight_matrix(params["w1"], C0P)                   # (16, 72)
    w2m = _conv_weight_matrix(params["w2"], C1)                    # (32, 144)
    b1 = params["b1"].reshape(C1, 1)
    b2 = params["b2"].reshape(C2, 1)
    fw1 = params["fc1_w"].astype(jnp.bfloat16)                     # (512, 256)
    fb1 = params["fc1_b"].reshape(1, HID1)
    fw2 = jnp.pad(params["fc2_w"],
                  ((0, 0), (0, HID2P - HID2))).astype(jnp.bfloat16)      # (256, 128)
    fb2 = jnp.pad(params["fc2_b"], (0, HID2P - HID2)).reshape(1, HID2P)
    fw3 = jnp.pad(params["fc3_w"],
                  ((0, HID2P - HID2), (0, OUTP - OUT_DIM))).astype(jnp.bfloat16)
    fb3 = jnp.pad(params["fc3_b"], (0, OUTP - OUT_DIM)).reshape(1, OUTP)

    sel1 = _pool_selector(n, H1, W1, L1P, L2P, pad_out=True)       # (768, 256) bf16
    sel2 = _pool_selector(n, H2, W2, L2P, S3P, pad_out=False)      # (256, 128) bf16

    operands = (x_flat, w1m, b1, sel1, w2m, b2, sel2,
                fw1, fb1, fw2, fb2, fw3, fb3)

    flops = 2 * (C1 * 9 * C0P * L1P + C1 * L1P * L2P
                 + C2 * 9 * C1 * L2P + C2 * L2P * S3P
                 + BATCH_PAD * (FEAT * HID1 + HID1 * HID2P + HID2P * OUTP))
    bytes_accessed = sum(int(np.prod(a.shape)) * a.dtype.itemsize
                         for a in operands) + BATCH_PAD * OUTP * 4

    # TODO(synk): at the real module sizes (3x515x613 input, 32*257*306 feats)
    # this single-block kernel must be tiled: parallel grid over batch/spatial
    # tiles (dimension_semantics=("parallel", ...) for the v7x dual
    # TensorCores), strided in-kernel pool selection instead of the dense 0/1
    # selectors, and tiling re-derived against v7x's 64 MiB VMEM.
    out = pl.pallas_call(
        _cnn_kernel,
        out_shape=jax.ShapeDtypeStruct((BATCH_PAD, OUTP), jnp.float32),
        in_specs=[_VMEM] * len(operands),
        out_specs=_VMEM,
        scratch_shapes=[pltpu.VMEM((BATCH_PAD, FEAT), jnp.float32)],
        cost_estimate=pl.CostEstimate(flops=flops, transcendentals=0,
                                      bytes_accessed=bytes_accessed),
    )(*operands)

    # Strip lane/batch padding, then Unflatten(1, (P, 3)).
    return out[:n, :OUT_DIM].reshape(n, NUM_POINTS, 3)


# ---------------------------------------------------------------------------
# Pure-JAX f32 reference of the PyTorch module (for the numerical check)
# ---------------------------------------------------------------------------
def cnn_reference(x_nchw, params):
    def conv(x, w, b):
        y = jax.lax.conv_general_dilated(
            x, w, window_strides=(1, 1), padding=((1, 1), (1, 1)),
            dimension_numbers=("NCHW", "OIHW", "NCHW"))
        return jax.nn.relu(y + b.reshape(1, -1, 1, 1))

    def pool(x):
        return jax.lax.reduce_window(x, -jnp.inf, jax.lax.max,
                                     (1, 1, 2, 2), (1, 1, 2, 2), "VALID")

    h = pool(conv(x_nchw, params["w1"], params["b1"]))
    h = pool(conv(h, params["w2"], params["b2"]))
    h = h.reshape(x_nchw.shape[0], -1)                              # NCHW flatten
    h = jax.nn.relu(h @ params["fc1_w"] + params["fc1_b"])
    h = jax.nn.relu(h @ params["fc2_w"] + params["fc2_b"])
    h = h @ params["fc3_w"] + params["fc3_b"]
    return h.reshape(x_nchw.shape[0], NUM_POINTS, 3)


# ---------------------------------------------------------------------------
if __name__ == "__main__":
    _detect_roll_semantics()      # one tiny eager probe, before tracing

    key = jax.random.PRNGKey(0)
    k_x, k_p = jax.random.split(key)
    x = jax.random.normal(k_x, (N_BATCH, C0, H1, W1), dtype=jnp.float32)
    params = init_params(k_p)

    out = jax.block_until_ready(jax.jit(cnn_forward)(x, params))

    assert out.shape == (N_BATCH, NUM_POINTS, 3), out.shape
    assert out.dtype == jnp.float32
    assert bool(jnp.all(jnp.isfinite(out)))

    # Numerical check vs. a pure-JAX f32 reference of the PyTorch module.
    # Tolerance covers the intentional bf16 MXU operands (f32 accumulation).
    ref = cnn_reference(x, params)
    err = float(jnp.max(jnp.abs(out - ref)))
    assert err < 2e-2, f"max |pallas - reference| = {err}"

    print("KERNEL_OK")
</pallas_src>

<mosaic_0001>
module attributes {stable_mosaic.version = 11 : i64} {
  func.func @_probe(%arg0: memref<8x128xf32, #tpu.memory_space<vmem>>, %arg1: memref<8x128xf32, #tpu.memory_space<vmem>>) attributes {dimension_semantics = [], scalar_prefetch = 0 : i64, scratch_operands = 0 : i64, tpu.core_type = #tpu.core_type<tc>} {
    %c0 = arith.constant 0 : index
    %c0_0 = arith.constant 0 : index
    %0 = vector.load %arg0[%c0, %c0_0] : memref<8x128xf32, #tpu.memory_space<vmem>>, vector<8x128xf32>
    %c1_i32 = arith.constant 1 : i32
    %1 = tpu.dynamic_rotate %0 by %c1_i32 dim 1 : vector<8x128xf32>, i32 -> vector<8x128xf32>
    %c0_1 = arith.constant 0 : index
    %c0_2 = arith.constant 0 : index
    %2 = vector.load %arg1[%c0_1, %c0_2] : memref<8x128xf32, #tpu.memory_space<vmem>>, vector<8x128xf32>
    tpu.vector_store %arg1[%c0_1, %c0_2], %1 {strides = array<i32>} : memref<8x128xf32, #tpu.memory_space<vmem>>, vector<8x128xf32>,
    return
  }
}

</mosaic_0001>

<llo_original>
// kernel: tpu_custom_call.1
$region0: #{tpu_custom_call.1}
  #allocation0 [shape = 'u32[]', space=smem, size = 0x4, offset = 0x4, fixed_abs, tag = 'smem constant byte address 0x4 - core index']
  #allocation1 [shape = 'u32[144,128]{1,0:T(1,128)}', space=vmem, size = 0x12000, scoped, tag = 'internal scratch']
  %s0 = inlined_call_operand.hbm [shape: f32[8,128], index: 0, kind: input, shape index: {}]
  %s1 = inlined_call_operand.hbm [shape: f32[8,128], index: 1, kind: output, shape index: {}]
  %s2 = sld [smem:[#allocation0]]
  $region18: #{tpu_custom_call.1} parent=0
    _
  %s4 = ssub.s32 1, %s2
  %s5 = scalar_select 0, %s4, %s2
  $region1: #{tpu_custom_call.1} parent=0
    #allocation2 [shape = 'u8[4096]{0}', space=vmem, size = 0x1000, scoped, tag = 'input window, operand 0, single buffered']
    #allocation3 [shape = 's32[1]{0}', space=sflag, size = 0x4, scoped, tag = 'scoped memory for tpu_custom_call.1']
    #allocation4 [shape = 's32[1]{0}', space=sflag, size = 0x4, scoped, tag = 'scoped memory for tpu_custom_call.1']
    #allocation5 [shape = 'u8[4096]{0}', space=vmem, size = 0x1000, scoped, tag = 'output window, operand 0, single buffered']
    %6 = vsyncpa [#allocation3], 0
    %7 = vsyncpa [#allocation4], 0
    // Predicated region
    $region2: #{tpu_custom_call.1} parent=1 // pred_check
      _
    $region3: #{tpu_custom_call.1} parent=1 // pred_check_branch
      %9 = sbr.rel (0) target = $region5
    $region4: #{tpu_custom_call.1} parent=1 // pred_region
      %s11 = ssub.s32 128, 128
      %12 = vsyncadd [#allocation3], %s11
      %s14 = sshll.u32 [#allocation2], 4
      %s15 = int_to_ptr.vmem [resolvable:$true] %s14
      %17 = dma.hbm_to_vmem [thread:$0]  %s0, 128, %s15, [#allocation3]
    $region5: #{tpu_custom_call.1} parent=1 // pred_fallthru
      _
    // Predicated region
    $region6: #{tpu_custom_call.1} parent=1 // pred_check
      _
    $region7: #{tpu_custom_call.1} parent=1 // pred_check_branch
      %19 = sbr.rel (0) target = $region9
    $region8: #{tpu_custom_call.1} parent=1 // pred_region
      %20 = dma.done [#allocation3], 128
    $region9: #{tpu_custom_call.1} parent=1 // pred_fallthru
      _
    %v21 = vld [vmem:[#allocation2] sm:$0xff]
    %22 = vrot.lane.b32.xlu0 %v21, 1
    %v23 = vpop.permute.xlu0 %22
    %24 = vst [vmem:[#allocation5] sm:$0xff] %v23
    // Predicated region
    $region10: #{tpu_custom_call.1} parent=1 // pred_check
      _
    $region11: #{tpu_custom_call.1} parent=1 // pred_check_branch
      %26 = sbr.rel (0) target = $region13
    $region12: #{tpu_custom_call.1} parent=1 // pred_region
      %s28 = ssub.s32 128, 128
      %29 = vsyncadd [#allocation4], %s28
      %s31 = sshll.u32 [#allocation5], 4
      %s32 = int_to_ptr.vmem [resolvable:$true] %s31
      %34 = dma.vmem_to_hbm [thread:$0]  %s32, 128, %s1, [#allocation4]
    $region13: #{tpu_custom_call.1} parent=1 // pred_fallthru
      _
    // Predicated region
    $region14: #{tpu_custom_call.1} parent=1 // pred_check
      _
    $region15: #{tpu_custom_call.1} parent=1 // pred_check_branch
      %36 = sbr.rel (0) target = $region17
    $region16: #{tpu_custom_call.1} parent=1 // pred_region
      %37 = dma.done [#allocation4], 128
    $region17: #{tpu_custom_call.1} parent=1 // pred_fallthru
      _
    %38 = vsyncpa [#allocation3], 1
    %39 = vsyncpa [#allocation4], 1

</llo_original>
